<compile_context>
chip_gen: v7x
topology: tpu7x:2x2x1
jax: 0.10.0
libtpu: 0.0.40
codegen_flags: <defaults>
</compile_context>

<pallas_src>
import jax
import jax.numpy as jnp
from jax.experimental import pallas as pl
from jax.experimental.pallas import tpu as pltpu


_LANE = 128
_MAX_LANE_MULT = 256                    # cap lane width at 256*128 = 32768 lanes
_MIN_BLOCKS_BYTES = 1 * 1024 * 1024     # arrays >= 1 MiB get >= _MIN_BLOCKS grid steps
_MIN_BLOCKS = 4                         # pipelining + 2-TC sharding on v7x
_RAGGED_BLOCK_RAW_BYTES = 512 * 1024    # raw bytes per (1, W) ragged block (pads ~8x in VMEM)


def _identity_kernel(x_ref, o_ref):
    # Pure pass-through: the base class defines no compute.
    o_ref[...] = x_ref[...]


def _hw_tuning():
    """Return (block_bytes_target, vmem_limit_bytes) sized per TPU generation."""
    try:
        vmem_bytes = int(pltpu.get_tpu_info().vmem_capacity_bytes)
    except Exception:
        vmem_bytes = 64 * 1024 * 1024           # conservative floor (v7x)
    if vmem_bytes >= 96 * 1024 * 1024:          # v5e / v6e: 128 MiB VMEM per core
        return 16 * 1024 * 1024, 80 * 1024 * 1024
    return 8 * 1024 * 1024, 40 * 1024 * 1024    # v7x: 64 MiB VMEM per core


def _largest_divisor_leq(m, cap):
    for d in range(min(m, cap), 0, -1):
        if m % d == 0:
            return d
    return 1


def _pick_block_rows(rows, rows_budget, sub_mult, min_blocks):
    """Largest sublane-multiple block that divides rows, fits the byte budget,
    and (when requested) yields at least `min_blocks` grid steps."""
    if rows <= sub_mult:
        return rows                              # single full block along rows
    if min_blocks <= 1 and rows <= rows_budget:
        return rows                              # whole array fits in one block
    upper = min(rows, rows_budget)
    if min_blocks > 1:
        upper = min(upper, max(sub_mult, rows // min_blocks))
    upper = max(sub_mult, (upper // sub_mult) * sub_mult)
    d = upper
    while d >= sub_mult:                         # exact divisor -> no masked tail block
        if rows % d == 0:
            return d
        d -= sub_mult
    return upper                                 # fallback: masked tail (correct, rare)


def model_base_forward(x):
    """Identity 'forward' for the abstract ModelBase, as a Pallas TPU kernel.

    For the aliased identity to be truly zero-copy, call this under
    jax.jit(..., donate_argnums=0); without donation XLA inserts a defensive
    copy of the input before the aliased custom call (still correct).
    """
    orig_shape = x.shape
    dtype = x.dtype
    n = int(x.size)
    if n == 0:
        return x

    itemsize = jnp.dtype(dtype).itemsize
    # Native packed sublane multiple: 8 for f32, 16 for bf16, 32 for int8/fp8.
    sub_mult = max(8, 32 // max(1, itemsize))
    block_bytes_target, vmem_limit_bytes = _hw_tuning()
    n_bytes = n * itemsize
    min_blocks = _MIN_BLOCKS if n_bytes >= _MIN_BLOCKS_BYTES else 1

    if n % _LANE == 0:
        # ---- Main path: no padding needed. Build a lane-dense 2D view. ----
        m = n // _LANE
        max_w_mult = min(_MAX_LANE_MULT, m)
        if m >= min_blocks * sub_mult:
            # Keep enough rows to actually form >= min_blocks blocks.
            max_w_mult = min(max_w_mult, m // (min_blocks * sub_mult))
        w_mult = _largest_divisor_leq(m, max(1, max_w_mult))
        width = _LANE * w_mult                   # wide multiple of 128 -> unmasked vst
        rows = n // width

        rows_budget = max(1, block_bytes_target // (width * itemsize))
        block_rows = _pick_block_rows(rows, rows_budget, sub_mult, min_blocks)

        grid = (pl.cdiv(rows, block_rows),)
        x2d = x.reshape(rows, width)

        out2d = pl.pallas_call(
            _identity_kernel,
            out_shape=jax.ShapeDtypeStruct((rows, width), dtype),
            grid_spec=pltpu.PrefetchScalarGridSpec(
                num_scalar_prefetch=0,
                grid=grid,
                in_specs=[pl.BlockSpec((block_rows, width), lambda i: (i, 0))],
                out_specs=pl.BlockSpec((block_rows, width), lambda i: (i, 0)),
            ),
            input_output_aliases={0: 0},         # identity: alias in -> out
            compiler_params=pltpu.CompilerParams(
                dimension_semantics=("parallel",),   # lets v7x shard grid across 2 TCs
                vmem_limit_bytes=vmem_limit_bytes,
            ),
        )(x2d)
        return out2d.reshape(orig_shape)

    # ---- Ragged fallback (n % 128 != 0): column-tiled (1, W) blocks. ----
    # Each (1, W) block pads to 8 sublanes in VMEM (~8x raw), so W is capped at
    # ~512 KiB raw: <= ~16 MiB live with double-buffered in+out, never OOM.
    block_w = max(_LANE, (_RAGGED_BLOCK_RAW_BYTES // itemsize // _LANE) * _LANE)
    if n <= block_w:
        block_w = n                               # single full-array block (tiny inputs)
    grid = (pl.cdiv(n, block_w),)
    x2d = x.reshape(1, n)

    out2d = pl.pallas_call(
        _identity_kernel,
        out_shape=jax.ShapeDtypeStruct((1, n), dtype),
        grid_spec=pltpu.PrefetchScalarGridSpec(
            num_scalar_prefetch=0,
            grid=grid,
            in_specs=[pl.BlockSpec((1, block_w), lambda i: (0, i))],
            out_specs=pl.BlockSpec((1, block_w), lambda i: (0, i)),
        ),
        input_output_aliases={0: 0},
        compiler_params=pltpu.CompilerParams(
            dimension_semantics=("parallel",),
            vmem_limit_bytes=vmem_limit_bytes,
        ),
    )(x2d)
    return out2d.reshape(orig_shape)


if __name__ == "__main__":
    key = jax.random.PRNGKey(0)

    def make_main_input():
        # Small NCHW example input consistent with the module's synthetic usage.
        return jax.random.normal(key, (2, 4, 16, 16), dtype=jnp.float32)

    # Donate the input so input_output_aliases={0: 0} is honored (zero-copy).
    forward = jax.jit(model_base_forward, donate_argnums=0)

    x = make_main_input()
    y = jax.block_until_ready(forward(x))
    x_expected = make_main_input()               # regenerate (x was donated)
    assert y.shape == x_expected.shape and y.dtype == x_expected.dtype
    assert bool(jnp.allclose(y, x_expected)), "identity pass-through mismatch"

    # Ragged path (element count not a multiple of 128) — exercises the
    # bounded column-tiled fallback.
    xr = jax.random.normal(jax.random.PRNGKey(0), (7, 5), dtype=jnp.float32)
    yr = jax.block_until_ready(model_base_forward(xr))
    assert yr.shape == xr.shape and yr.dtype == xr.dtype
    assert bool(jnp.allclose(yr, xr)), "ragged identity mismatch"

    print("KERNEL_OK")
</pallas_src>

<mosaic_0001>
module attributes {stable_mosaic.version = 11 : i64} {
  func.func @_identity_kernel(%arg0: i32, %arg1: memref<8x256xf32, #tpu.memory_space<vmem>>, %arg2: memref<8x256xf32, #tpu.memory_space<vmem>>) attributes {dimension_semantics = [#tpu.dimension_semantics<parallel>], iteration_bounds = array<i64: 1>, scalar_prefetch = 0 : i64, scratch_operands = 0 : i64, tpu.core_type = #tpu.core_type<tc>, window_params = [{transform_indices = @transform_0, window_bounds = array<i64: 8, 256>}, {transform_indices = @transform_1, window_bounds = array<i64: 8, 256>}]} {
    %c0 = arith.constant 0 : index
    %c0_0 = arith.constant 0 : index
    %0 = vector.load %arg1[%c0, %c0_0] : memref<8x256xf32, #tpu.memory_space<vmem>>, vector<8x256xf32>
    %c0_1 = arith.constant 0 : index
    %c0_2 = arith.constant 0 : index
    %1 = vector.load %arg2[%c0_1, %c0_2] : memref<8x256xf32, #tpu.memory_space<vmem>>, vector<8x256xf32>
    tpu.vector_store %arg2[%c0_1, %c0_2], %0 {strides = array<i32>} : memref<8x256xf32, #tpu.memory_space<vmem>>, vector<8x256xf32>,
    return
  }
  func.func @transform_0(%arg0: i32) -> (i32, i32) {
    %c0_i32 = arith.constant 0 : i32
    %c0_i32_0 = arith.constant 0 : i32
    return %arg0, %c0_i32 : i32, i32
  }
  func.func @transform_1(%arg0: i32) -> (i32, i32) {
    %c0_i32 = arith.constant 0 : i32
    %c0_i32_0 = arith.constant 0 : i32
    return %arg0, %c0_i32 : i32, i32
  }
}

</mosaic_0001>

<llo_original>
// kernel: model_base_forward.1
$region0: #{model_base_forward.1}
  #allocation0 [shape = 'u32[]', space=smem, size = 0x4, offset = 0x4, fixed_abs, tag = 'smem constant byte address 0x4 - core index']
  #allocation1 [shape = 'u32[144,128]{1,0:T(1,128)}', space=vmem, size = 0x12000, scoped, tag = 'internal scratch']
  %s0 = inlined_call_operand.vmem [shape: f32[8,256], index: 0, kind: input, shape index: {}, may-alias: {0,1}]
  %s1 = inlined_call_operand.vmem [shape: f32[8,256], index: 1, kind: output, shape index: {}, may-alias: {0,1}]
  %s2 = sld [smem:[#allocation0]]
  $region14: #{model_base_forward.1} parent=0
    _
  %s4 = ssub.s32 1, %s2
  %s5 = scalar_select 0, %s4, %s2
  // Predicated region
  $region2: #{model_base_forward.1} parent=0 // pred_check
    _
  $region3: #{model_base_forward.1} parent=0 // pred_check_branch
    %7 = sbr.rel (0) target = $region5
  $region4: #{model_base_forward.1} parent=0 // pred_region
    _
  $region5: #{model_base_forward.1} parent=0 // pred_fallthru
    _
  %v8 = vld [vmem:[%s0] sm:$0xff]
  %v9 = vld [vmem:[%s0 + $0x8] sm:$0xff]
  %10 = vst [vmem:[%s1] sm:$0xff] %v8
  %11 = vst [vmem:[%s1 + $0x8] sm:$0xff] %v9
  // Predicated region
  $region6: #{model_base_forward.1} parent=0 // pred_check
    _
  $region7: #{model_base_forward.1} parent=0 // pred_check_branch
    %13 = sbr.rel (0) target = $region9
  $region8: #{model_base_forward.1} parent=0 // pred_region
    _
  $region9: #{model_base_forward.1} parent=0 // pred_fallthru
    _
  // Predicated region
  $region10: #{model_base_forward.1} parent=0 // pred_check
    _
  $region11: #{model_base_forward.1} parent=0 // pred_check_branch
    %15 = sbr.rel (0) target = $region13
  $region12: #{model_base_forward.1} parent=0 // pred_region
    _
  $region13: #{model_base_forward.1} parent=0 // pred_fallthru
    _

</llo_original>
